<compile_context>
chip_gen: v7x
topology: tpu7x:2x2x1
jax: 0.10.0
libtpu: 0.0.40
codegen_flags: <defaults>
</compile_context>

<pallas_src>
import jax
import jax.numpy as jnp
from jax import lax
from jax.experimental import pallas as pl
from jax.experimental.pallas import tpu as pltpu


# ----------------------------- kernel 1: fused QKV projection ----------------

def _qkv_proj_kernel(x_ref, w_ref, q_ref, k_ref, v_ref):
    # x_ref: (1, C, thw) f32, w_ref: (2*Cq + C, C) compute dtype (bf16)
    # q_ref/k_ref: (1, Cq, thw), v_ref: (1, C, thw) compute dtype outputs.
    x = x_ref[0].astype(w_ref.dtype)                       # cast in-register (VPU)
    qkv = jnp.dot(w_ref[...], x,
                  preferred_element_type=jnp.float32)      # (2Cq+C, thw) f32 acc
    cq = q_ref.shape[1]
    q_ref[0] = qkv[:cq].astype(q_ref.dtype)
    k_ref[0] = qkv[cq:2 * cq].astype(k_ref.dtype)
    v_ref[0] = qkv[2 * cq:].astype(v_ref.dtype)


# ----------------------------- kernel 2: flash attention ---------------------

def _flash_attn_kernel(q_ref, k_ref, v_ref, o_ref, m_sc, l_sc, acc_sc):
    # q_ref: (1, Cq, tq), k_ref: (1, Cq, tk), v_ref: (1, C, tk)  [compute dtype]
    # o_ref: (1, C, tq) f32
    # scratch: m_sc/l_sc (1, tq) f32, acc_sc (C, tq) f32
    ki = pl.program_id(2)

    @pl.when(ki == 0)
    def _init():
        m_sc[...] = jnp.full_like(m_sc, -jnp.inf)
        l_sc[...] = jnp.zeros_like(l_sc)
        acc_sc[...] = jnp.zeros_like(acc_sc)

    q = q_ref[0]                                            # (Cq, tq)
    k = k_ref[0]                                            # (Cq, tk)
    v = v_ref[0]                                            # (C, tk)

    # st[j, i] = sum_c K[c, j] * Q[c, i]  -> (tk, tq); softmax runs over j
    # (sublane axis), so the per-query max/sum come out as (1, tq) row vectors
    # that broadcast directly over the (C, tq) accumulator's lane axis.
    st = lax.dot_general(k, q, dimension_numbers=(((0,), (0,)), ((), ())),
                         preferred_element_type=jnp.float32)

    m_prev = m_sc[...]                                      # (1, tq)
    m_new = jnp.maximum(m_prev, jnp.max(st, axis=0, keepdims=True))
    alpha = jnp.exp(m_prev - m_new)                         # (1, tq); 0 at ki==0
    p = jnp.exp(st - m_new)                                 # (tk, tq) f32

    l_sc[...] = alpha * l_sc[...] + jnp.sum(p, axis=0, keepdims=True)

    # acc[c, i] <- alpha[i]*acc[c, i] + sum_j V[c, j] * p[j, i]
    pv = lax.dot_general(v, p.astype(v.dtype),
                         dimension_numbers=(((1,), (0,)), ((), ())),
                         preferred_element_type=jnp.float32)   # (C, tq)
    acc_sc[...] = alpha * acc_sc[...] + pv
    m_sc[...] = m_new

    @pl.when(ki == pl.num_programs(2) - 1)
    def _finalize():
        o_ref[0] = (acc_sc[...] *
                    pl.reciprocal(l_sc[...], approx=True)).astype(o_ref.dtype)


# ----------------------------- wrapper ---------------------------------------

def _pick_tile(n, cap):
    """Largest lane-aligned tile that divides n (falls back to full extent)."""
    if n <= cap:
        return n
    t = (cap // 128) * 128
    while t >= 128:
        if n % t == 0:
            return t
        t -= 128
    return n  # no aligned divisor: monolithic (still correct, just un-tiled)


def self_attention_pallas(x_nchw, wq, wk, wv, *, tq_cap=512, tk_cap=512,
                          compute_dtype=jnp.bfloat16):
    """x_nchw: (B, C, H, W) f32. wq/wk: (Cq, C); wv: (C, C) (1x1 conv weights)."""
    B, C, H, W = x_nchw.shape
    HW = H * W
    Cq = wq.shape[0]

    x_seq = x_nchw.reshape(B, C, HW)                         # free reshape (NCHW native)
    w_fused = jnp.concatenate([wq, wk, wv], axis=0).astype(compute_dtype)  # (2Cq+C, C)

    # ---- kernel 1: fused QKV projection, one wide matmul per (batch, hw-tile) ----
    thw = _pick_tile(HW, 1024)
    q, k, v = pl.pallas_call(
        _qkv_proj_kernel,
        out_shape=(
            jax.ShapeDtypeStruct((B, Cq, HW), compute_dtype),
            jax.ShapeDtypeStruct((B, Cq, HW), compute_dtype),
            jax.ShapeDtypeStruct((B, C, HW), compute_dtype),
        ),
        grid_spec=pltpu.PrefetchScalarGridSpec(
            num_scalar_prefetch=0,
            grid=(B, HW // thw),
            in_specs=[
                pl.BlockSpec((1, C, thw), lambda b, s: (b, 0, s)),
                pl.BlockSpec((2 * Cq + C, C), lambda b, s: (0, 0)),
            ],
            out_specs=(
                pl.BlockSpec((1, Cq, thw), lambda b, s: (b, 0, s)),
                pl.BlockSpec((1, Cq, thw), lambda b, s: (b, 0, s)),
                pl.BlockSpec((1, C, thw), lambda b, s: (b, 0, s)),
            ),
        ),
        compiler_params=pltpu.CompilerParams(
            dimension_semantics=("parallel", "parallel"),
            vmem_limit_bytes=32 * 1024 * 1024),
    )(x_seq, w_fused)

    # ---- kernel 2: flash attention over spatial positions ----
    tq = _pick_tile(HW, tq_cap)
    tk = _pick_tile(HW, tk_cap)
    # TODO(synk): partial (non-dividing) kv tiles would need masking; _pick_tile
    # avoids them by falling back to the full extent.

    out_seq = pl.pallas_call(
        _flash_attn_kernel,
        out_shape=jax.ShapeDtypeStruct((B, C, HW), x_nchw.dtype),
        grid_spec=pltpu.PrefetchScalarGridSpec(
            num_scalar_prefetch=0,
            grid=(B, HW // tq, HW // tk),
            in_specs=[
                pl.BlockSpec((1, Cq, tq), lambda b, qi, ki: (b, 0, qi)),
                pl.BlockSpec((1, Cq, tk), lambda b, qi, ki: (b, 0, ki)),
                pl.BlockSpec((1, C, tk), lambda b, qi, ki: (b, 0, ki)),
            ],
            out_specs=pl.BlockSpec((1, C, tq), lambda b, qi, ki: (b, 0, qi)),
            scratch_shapes=[
                pltpu.VMEM((1, tq), jnp.float32),   # running max  m
                pltpu.VMEM((1, tq), jnp.float32),   # running sum  l
                pltpu.VMEM((C, tq), jnp.float32),   # output accumulator
            ],
        ),
        compiler_params=pltpu.CompilerParams(
            dimension_semantics=("parallel", "parallel", "arbitrary"),
            vmem_limit_bytes=32 * 1024 * 1024),
    )(q, k, v)

    return out_seq.reshape(B, C, H, W)


# ----------------------------- reference & test -------------------------------

def _kaiming_normal(key, out_c, in_c):
    # nn.init.kaiming_normal_ default: fan_in mode, gain = sqrt(2)
    std = jnp.sqrt(2.0 / in_c)
    return std * jax.random.normal(key, (out_c, in_c), dtype=jnp.float32)


def _reference(x, wq, wk, wv, compute_dtype=jnp.bfloat16):
    """Pure-XLA reference mirroring the kernel's mixed precision (bf16 MXU
    operands, f32 accumulation and softmax)."""
    B, C, H, W = x.shape
    HW = H * W
    Cq = wq.shape[0]
    xf = x.reshape(B, C, HW).astype(compute_dtype)
    wqkv = jnp.concatenate([wq, wk, wv], axis=0).astype(compute_dtype)
    qkv = jnp.einsum('oc,bcs->bos', wqkv, xf,
                     preferred_element_type=jnp.float32).astype(compute_dtype)
    q, k, v = qkv[:, :Cq], qkv[:, Cq:2 * Cq], qkv[:, 2 * Cq:]
    s = jnp.einsum('bci,bcj->bij', q, k, preferred_element_type=jnp.float32)
    p = jnp.exp(s - jnp.max(s, axis=-1, keepdims=True))            # (B, I, J)
    num = jnp.einsum('bcj,bij->bci', v, p.astype(compute_dtype),
                     preferred_element_type=jnp.float32)           # (B, C, I)
    denom = jnp.sum(p, axis=-1)                                     # (B, I)
    out = num / denom[:, None, :]
    return out.reshape(B, C, H, W).astype(x.dtype)


if __name__ == "__main__":
    B, C, H, W = 2, 4, 16, 16
    reduction_ratio = 2
    Cq = C // reduction_ratio

    key = jax.random.PRNGKey(0)
    kx, kq, kk, kv = jax.random.split(key, 4)
    x = jax.random.normal(kx, (B, C, H, W), dtype=jnp.float32)

    # deterministic kaiming-normal weights; conv biases init to 0 (add omitted)
    wq = _kaiming_normal(kq, Cq, C)
    wk = _kaiming_normal(kk, Cq, C)
    wv = _kaiming_normal(kv, C, C)

    out = self_attention_pallas(x, wq, wk, wv)
    out = jax.block_until_ready(out)

    ref = _reference(x, wq, wk, wv)
    assert out.shape == (B, C, H, W)
    assert jnp.allclose(out, ref, atol=1e-2, rtol=1e-2), (
        "mismatch vs reference: max abs err = "
        f"{float(jnp.max(jnp.abs(out - ref)))}")

    print("KERNEL_OK")
</pallas_src>

<mosaic_0001>
module attributes {stable_mosaic.version = 11 : i64} {
  func.func @_qkv_proj_kernel(%arg0: i32, %arg1: i32, %arg2: memref<1x4x256xf32, #tpu.memory_space<vmem>>, %arg3: memref<8x4xbf16, #tpu.memory_space<vmem>>, %arg4: memref<1x2x256xbf16, #tpu.memory_space<vmem>>, %arg5: memref<1x2x256xbf16, #tpu.memory_space<vmem>>, %arg6: memref<1x4x256xbf16, #tpu.memory_space<vmem>>) attributes {dimension_semantics = [#tpu.dimension_semantics<parallel>, #tpu.dimension_semantics<parallel>], iteration_bounds = array<i64: 2, 1>, scalar_prefetch = 0 : i64, scratch_operands = 0 : i64, tpu.core_type = #tpu.core_type<tc>, window_params = [{transform_indices = @transform_0, window_bounds = array<i64: 1, 4, 256>}, {pipeline_mode = #tpu.pipeline_mode<synchronous>, transform_indices = @transform_1, window_bounds = array<i64: 8, 4>}, {transform_indices = @transform_2, window_bounds = array<i64: 1, 2, 256>}, {transform_indices = @transform_3, window_bounds = array<i64: 1, 2, 256>}, {transform_indices = @transform_4, window_bounds = array<i64: 1, 4, 256>}]} {
    %c0 = arith.constant 0 : index
    %c0_0 = arith.constant 0 : index
    %c0_1 = arith.constant 0 : index
    %0 = vector.load %arg2[%c0, %c0_0, %c0_1] : memref<1x4x256xf32, #tpu.memory_space<vmem>>, vector<1x4x256xf32>
    %1 = vector.shape_cast %0 : vector<1x4x256xf32> to vector<4x256xf32>
    %2 = arith.truncf %1 : vector<4x256xf32> to vector<4x256xbf16>
    %c0_2 = arith.constant 0 : index
    %c0_3 = arith.constant 0 : index
    %3 = vector.load %arg3[%c0_2, %c0_3] : memref<8x4xbf16, #tpu.memory_space<vmem>>, vector<8x4xbf16>
    %cst = arith.constant dense<0.000000e+00> : vector<8x256xf32>
    %4 = tpu.matmul %3, %2, %cst {dimension_numbers = #tpu.dot_dimension_numbers<[1], [0], [0], [1], [0, 0, 1, 1], [], []>} : vector<8x4xbf16>, vector<4x256xbf16>, vector<8x256xf32> -> vector<8x256xf32>
    %5 = vector.extract_strided_slice %4 {offsets = [0, 0], sizes = [2, 256], strides = [1, 1]} : vector<8x256xf32> to vector<2x256xf32>
    %6 = arith.truncf %5 : vector<2x256xf32> to vector<2x256xbf16>
    %c0_4 = arith.constant 0 : index
    %c0_5 = arith.constant 0 : index
    %c0_6 = arith.constant 0 : index
    %7 = vector.load %arg4[%c0_4, %c0_5, %c0_6] : memref<1x2x256xbf16, #tpu.memory_space<vmem>>, vector<1x2x256xbf16>
    %8 = vector.shape_cast %7 : vector<1x2x256xbf16> to vector<2x256xbf16>
    %9 = vector.shape_cast %6 : vector<2x256xbf16> to vector<1x2x256xbf16>
    tpu.vector_store %arg4[%c0_4, %c0_5, %c0_6], %9 {strides = array<i32>} : memref<1x2x256xbf16, #tpu.memory_space<vmem>>, vector<1x2x256xbf16>,
    %10 = vector.extract_strided_slice %4 {offsets = [2, 0], sizes = [2, 256], strides = [1, 1]} : vector<8x256xf32> to vector<2x256xf32>
    %11 = arith.truncf %10 : vector<2x256xf32> to vector<2x256xbf16>
    %c0_7 = arith.constant 0 : index
    %c0_8 = arith.constant 0 : index
    %c0_9 = arith.constant 0 : index
    %12 = vector.load %arg5[%c0_7, %c0_8, %c0_9] : memref<1x2x256xbf16, #tpu.memory_space<vmem>>, vector<1x2x256xbf16>
    %13 = vector.shape_cast %12 : vector<1x2x256xbf16> to vector<2x256xbf16>
    %14 = vector.shape_cast %11 : vector<2x256xbf16> to vector<1x2x256xbf16>
    tpu.vector_store %arg5[%c0_7, %c0_8, %c0_9], %14 {strides = array<i32>} : memref<1x2x256xbf16, #tpu.memory_space<vmem>>, vector<1x2x256xbf16>,
    %15 = vector.extract_strided_slice %4 {offsets = [4, 0], sizes = [4, 256], strides = [1, 1]} : vector<8x256xf32> to vector<4x256xf32>
    %16 = arith.truncf %15 : vector<4x256xf32> to vector<4x256xbf16>
    %c0_10 = arith.constant 0 : index
    %c0_11 = arith.constant 0 : index
    %c0_12 = arith.constant 0 : index
    %17 = vector.load %arg6[%c0_10, %c0_11, %c0_12] : memref<1x4x256xbf16, #tpu.memory_space<vmem>>, vector<1x4x256xbf16>
    %18 = vector.shape_cast %17 : vector<1x4x256xbf16> to vector<4x256xbf16>
    %19 = vector.shape_cast %16 : vector<4x256xbf16> to vector<1x4x256xbf16>
    tpu.vector_store %arg6[%c0_10, %c0_11, %c0_12], %19 {strides = array<i32>} : memref<1x4x256xbf16, #tpu.memory_space<vmem>>, vector<1x4x256xbf16>,
    return
  }
  func.func @transform_0(%arg0: i32, %arg1: i32) -> (i32, i32, i32) {
    %c0_i32 = arith.constant 0 : i32
    %c0_i32_0 = arith.constant 0 : i32
    return %arg0, %c0_i32, %arg1 : i32, i32, i32
  }
  func.func @transform_1(%arg0: i32, %arg1: i32) -> (i32, i32) {
    %c0_i32 = arith.constant 0 : i32
    %c0_i32_0 = arith.constant 0 : i32
    %c0_i32_1 = arith.constant 0 : i32
    return %c0_i32, %c0_i32_0 : i32, i32
  }
  func.func @transform_2(%arg0: i32, %arg1: i32) -> (i32, i32, i32) {
    %c0_i32 = arith.constant 0 : i32
    %c0_i32_0 = arith.constant 0 : i32
    return %arg0, %c0_i32, %arg1 : i32, i32, i32
  }
  func.func @transform_3(%arg0: i32, %arg1: i32) -> (i32, i32, i32) {
    %c0_i32 = arith.constant 0 : i32
    %c0_i32_0 = arith.constant 0 : i32
    return %arg0, %c0_i32, %arg1 : i32, i32, i32
  }
  func.func @transform_4(%arg0: i32, %arg1: i32) -> (i32, i32, i32) {
    %c0_i32 = arith.constant 0 : i32
    %c0_i32_0 = arith.constant 0 : i32
    return %arg0, %c0_i32, %arg1 : i32, i32, i32
  }
}

</mosaic_0001>

<llo_original>
// kernel: tpu_custom_call.1
$region0: #{tpu_custom_call.1}
  #allocation0 [shape = 'u32[]', space=smem, size = 0x4, offset = 0x4, fixed_abs, tag = 'smem constant byte address 0x4 - core index']
  #allocation1 [shape = 'u32[144,128]{1,0:T(1,128)}', space=vmem, size = 0x12000, scoped, tag = 'internal scratch']
  %s0 = inlined_call_operand.hbm [shape: f32[2,4,256], index: 0, kind: input, shape index: {}]
  %s1 = inlined_call_operand.vmem [shape: bf16[8,4], index: 1, kind: input, shape index: {}]
  %s2 = inlined_call_operand.hbm [shape: bf16[2,2,256], index: 2, kind: output, shape index: {0}]
  %s3 = inlined_call_operand.hbm [shape: bf16[2,2,256], index: 3, kind: output, shape index: {1}]
  %s4 = inlined_call_operand.hbm [shape: bf16[2,4,256], index: 4, kind: output, shape index: {2}]
  %5 = xla_tuple %s2, %s3, %s4
  %s6 = sld [smem:[#allocation0]]
  $region61: #{tpu_custom_call.1} parent=0
    _
  %s8 = ssub.s32 1, %s6
  %s9 = scalar_select 0, %s8, %s6
  $region1: #{tpu_custom_call.1} parent=0
    #allocation2 [shape = 'u8[8192]{0}', space=vmem, size = 0x2000, scoped, tag = 'input window, operand 0']
    #allocation3 [shape = 's32[2]{0}', space=sflag, size = 0x8, scoped, tag = 'scoped memory for tpu_custom_call.1']
    #allocation4 [shape = 's32[2]{0}', space=sflag, size = 0x8, scoped, tag = 'scoped memory for tpu_custom_call.1']
    #allocation5 [shape = 'u8[2048]{0}', space=vmem, size = 0x800, scoped, tag = 'output window, operand 0']
    #allocation6 [shape = 'u8[2048]{0}', space=vmem, size = 0x800, scoped, tag = 'output window, operand 1']
    #allocation7 [shape = 's32[2]{0}', space=sflag, size = 0x8, scoped, tag = 'scoped memory for tpu_custom_call.1']
    #allocation8 [shape = 'u8[4096]{0}', space=vmem, size = 0x1000, scoped, tag = 'output window, operand 2']
    %10 = vsyncpa [#allocation3], 0
    %s11 = scalar_lea.sflag [#allocation3], 1
    %12 = vsyncpa %s11, 0
    %13 = vsyncpa [#allocation4], 0
    %s14 = scalar_lea.sflag [#allocation4], 1
    %15 = vsyncpa %s14, 0
    %16 = vsyncpa [#allocation7], 0
    %s17 = scalar_lea.sflag [#allocation7], 1
    %18 = vsyncpa %s17, 0
    loop: start=0, step=1, limit=4
    $region2: #{tpu_custom_call.1} parent=1 // loop_pre_header
      _
    $region3: #{tpu_custom_call.1} parent=1 // loop_header
      %s20 = sphi 0, %s24
      %p21 = scmp.ge.s32.totalorder %s20, 4
      %s27 = sphi 0, %s39
      %s28 = sphi 0, %s35
      %s29 = sphi 0, %s27
      %s30 = sphi 0, %s28
      %s31 = sphi 0, %s29
      %s32 = sphi 0, %s30
      %s44 = sphi 0, %s46
      %s47 = sphi 0, %s44
      %s48 = sphi 0, %s47
      %s64 = sphi 0, %s48
      %s68 = sphi 0, %s68
      %s70 = sphi 0, %s68
      %s71 = sphi 0, %s70
      %s85 = sphi 0, %s71
      %s93 = sphi 0, %s95
      %s96 = sphi 0, %s93
      %s97 = sphi 0, %s96
      %s113 = sphi 0, %s97
      %s121 = sphi 0, %s123
      %s124 = sphi 0, %s121
      %s125 = sphi 0, %s124
      %s141 = sphi 0, %s125
      %s149 = sphi 0, %s151
      %s152 = sphi 0, %s149
      %s153 = sphi 0, %s152
      %s169 = sphi 0, %s153
    $region4: #{tpu_custom_call.1} parent=1 // loop_header_branch
      %23 = sbr.rel (%p21) target = $region8
    $region5: #{tpu_custom_call.1} parent=1 // loop_body
      %s25 = ssub.s32 %s20, 1
      %s26 = ssub.s32 %s20, 2
      %s33 = sadd.s32 1, %s28
      %p34 = scmp.ge.s32.totalorder %s33, 1
      %s35 = scalar_select %p34, 0, %s33
      %s36 = sadd.s32 1, %s27
      %s37 = scalar_select %p34, %s36, %s27
      %p38 = scmp.ge.s32.totalorder %s37, 2
      %s39 = scalar_select %p38, 0, %s37
      %s40 = ssub.s32 %s27, %s39
      %s41 = ssub.s32 %s28, %s35
      %s42 = sor.u32 %s40, %s41
      %p43 = scmp.eq.s32.totalorder %s42, 0
      %s45 = sadd.s32 %s44, 1
      %s46 = scalar_select %p43, %s44, %s45
      %p49 = pneg %p43
      %p50 = scmp.eq.s32.totalorder %s20, 1
      %p51 = por %p49, %p50
      %p52 = scmp.ne.s32.totalorder %s44, %s47
      %p53 = scmp.eq.s32.totalorder %s20, 0
      %p54 = por %p52, %p53
      %p55 = scmp.ne.s32.totalorder %s44, %s47
      %p56 = scmp.eq.s32.totalorder %s25, 1
      %p57 = por %p55, %p56
      %p58 = scmp.ne.s32.totalorder %s47, %s48
      %p59 = scmp.eq.s32.totalorder %s25, 0
      %p60 = por %p58, %p59
      %p61 = scmp.ne.s32.totalorder %s47, %s48
      %p62 = scmp.eq.s32.totalorder %s26, 1
      %p63 = por %p61, %p62
      %p65 = scmp.ne.s32.totalorder %s48, %s64
      %p66 = scmp.eq.s32.totalorder %s26, 0
      %p67 = por %p65, %p66
      %s69 = sadd.s32 %s68, 1
      %p72 = scmp.eq.s32.totalorder %s20, 1
      %p73 = scmp.ne.s32.totalorder %s68, %s70
      %p74 = scmp.eq.s32.totalorder %s20, 0
      %p75 = por %p73, %p74
      %p76 = scmp.ne.s32.totalorder %s68, %s70
      %p77 = scmp.eq.s32.totalorder %s25, 1
      %p78 = por %p76, %p77
      %p79 = scmp.ne.s32.totalorder %s70, %s71
      %p80 = scmp.eq.s32.totalorder %s25, 0
      %p81 = por %p79, %p80
      %p82 = scmp.ne.s32.totalorder %s70, %s71
      %p83 = scmp.eq.s32.totalorder %s26, 1
      %p84 = por %p82, %p83
      %p86 = scmp.ne.s32.totalorder %s71, %s85
      %p87 = scmp.eq.s32.totalorder %s26, 0
      %p88 = por %p86, %p87
      %s89 = ssub.s32 %s27, %s39
      %s90 = ssub.s32 %s28, %s35
      %s91 = sor.u32 %s89, %s90
      %p92 = scmp.eq.s32.totalorder %s91, 0
      %s94 = sadd.s32 %s93, 1
      %s95 = scalar_select %p92, %s93, %s94
      %p98 = pneg %p92
      %p99 = scmp.eq.s32.totalorder %s20, 1
      %p100 = por %p98, %p99
      %p101 = scmp.ne.s32.totalorder %s93, %s96
      %p102 = scmp.eq.s32.totalorder %s20, 0
      %p103 = por %p101, %p102
      %p104 = scmp.ne.s32.totalorder %s93, %s96
      %p105 = scmp.eq.s32.totalorder %s25, 1
      %p106 = por %p104, %p105
      %p107 = scmp.ne.s32.totalorder %s96, %s97
      %p108 = scmp.eq.s32.totalorder %s25, 0
      %p109 = por %p107, %p108
      %p110 = scmp.ne.s32.totalorder %s96, %s97
      %p111 = scmp.eq.s32.totalorder %s26, 1
      %p112 = por %p110, %p111
      %p114 = scmp.ne.s32.totalorder %s97, %s113
      %p115 = scmp.eq.s32.totalorder %s26, 0
      %p116 = por %p114, %p115
      %s117 = ssub.s32 %s27, %s39
      %s118 = ssub.s32 %s28, %s35
      %s119 = sor.u32 %s117, %s118
      %p120 = scmp.eq.s32.totalorder %s119, 0
      %s122 = sadd.s32 %s121, 1
      %s123 = scalar_select %p120, %s121, %s122
      %p126 = pneg %p120
      %p127 = scmp.eq.s32.totalorder %s20, 1
      %p128 = por %p126, %p127
      %p129 = scmp.ne.s32.totalorder %s121, %s124
      %p130 = scmp.eq.s32.totalorder %s20, 0
      %p131 = por %p129, %p130
      %p132 = scmp.ne.s32.totalorder %s121, %s124
      %p133 = scmp.eq.s32.totalorder %s25, 1
      %p134 = por %p132, %p133
      %p135 = scmp.ne.s32.totalorder %s124, %s125
      %p136 = scmp.eq.s32.totalorder %s25, 0
      %p137 = por %p135, %p136
      %p138 = scmp.ne.s32.totalorder %s124, %s125
      %p139 = scmp.eq.s32.totalorder %s26, 1
      %p140 = por %p138, %p139
      %p142 = scmp.ne.s32.totalorder %s125, %s141
      %p143 = scmp.eq.s32.totalorder %s26, 0
      %p144 = por %p142, %p143
      %s145 = ssub.s32 %s27, %s39
      %s146 = ssub.s32 %s28, %s35
      %s147 = sor.u32 %s145, %s146
      %p148 = scmp.eq.s32.totalorder %s147, 0
      %s150 = sadd.s32 %s149, 1
      %s151 = scalar_select %p148, %s149, %s150
      %p154 = pneg %p148
      %p155 = scmp.eq.s32.totalorder %s20, 1
      %p156 = por %p154, %p155
      %p157 = scmp.ne.s32.totalorder %s149, %s152
      %p158 = scmp.eq.s32.totalorder %s20, 0
      %p159 = por %p157, %p158
      %p160 = scmp.ne.s32.totalorder %s149, %s152
      %p161 = scmp.eq.s32.totalorder %s25, 1
      %p162 = por %p160, %p161
      %p163 = scmp.ne.s32.totalorder %s152, %s153
      %p164 = scmp.eq.s32.totalorder %s25, 0
      %p165 = por %p163, %p164
      %p166 = scmp.ne.s32.totalorder %s152, %s153
      %p167 = scmp.eq.s32.totalorder %s26, 1
      %p168 = por %p166, %p167
      %p170 = scmp.ne.s32.totalorder %s153, %s169
      %p171 = scmp.eq.s32.totalorder %s26, 0
      %p172 = por %p170, %p171
      %p173 = scmp.le.s32.totalorder 1, %s20
      %p174 = scmp.lt.s32.totalorder %s20, 3
      %p175 = pnand %p173, %p174
      %p176 = pneg %p175
      // Predicated region
      $region9: #{tpu_custom_call.1} parent=5 // pred_check
        _
      $region10: #{tpu_custom_call.1} parent=5 // pred_check_branch
        %178 = sbr.rel (%p175) target = $region12
      $region11: #{tpu_custom_call.1} parent=5 // pred_region
        %s179 = ssub.s32 %s20, 1
        // Predicated region
        $region13: #{tpu_custom_call.1} parent=11 // pred_check
          %p180 = pneg %p81
        $region14: #{tpu_custom_call.1} parent=11 // pred_check_branch
          %182 = sbr.rel (%p180) target = $region16
        $region15: #{tpu_custom_call.1} parent=11 // pred_region
          _
        $region16: #{tpu_custom_call.1} parent=11 // pred_fallthru
          _
      $region12: #{tpu_custom_call.1} parent=5 // pred_fallthru
        _
      %p183 = scmp.lt.s32.totalorder %s20, 2
      // Predicated region
      $region17: #{tpu_custom_call.1} parent=5 // pred_check
        %p184 = pneg %p183
      $region18: #{tpu_custom_call.1} parent=5 // pred_check_branch
        %186 = sbr.rel (%p184) target = $region20
      $region19: #{tpu_custom_call.1} parent=5 // pred_region
        // Predicated region
        $region21: #{tpu_custom_call.1} parent=19 // pred_check
          %p187 = pneg %p54
        $region22: #{tpu_custom_call.1} parent=19 // pred_check_branch
          %189 = sbr.rel (%p187) target = $region24
        $region23: #{tpu_custom_call.1} parent=19 // pred_region
          %s190 = sand.u32 %s44, 1
          %s191 = scalar_lea.sflag [#allocation3], %s190
          %s192 = sand.u32 %s44, 1
          %s193 = smul.addr %s192, 8
          %s194 = scalar_lea.vmem [#allocation2], %s193
          %s195 = smul.u32 2, %s28
          %s197 = ssub.s32 128, 128
          %198 = vsyncadd %s191, %s197
          %s199 = smul.addr %s27, 2
          %s200 = sadd.s32 %s195, %s199
          %s201 = smul.addr %s200, 64
          %s202 = scalar_lea.hbm %s0, %s201
          %s204 = sshll.u32 %s194, 4
          %s205 = int_to_ptr.vmem [resolvable:$true] %s204
          %207 = dma.hbm_to_vmem [thread:$0]  %s202, 128, %s205, %s191
        $region24: #{tpu_custom_call.1} parent=19 // pred_fallthru
          _
      $region20: #{tpu_custom_call.1} parent=5 // pred_fallthru
        _
      %p208 = scmp.le.s32.totalorder 1, %s20
      %p209 = scmp.lt.s32.totalorder %s20, 3
      %p210 = pnand %p208, %p209
      %p211 = pneg %p210
      // Predicated region
      $region25: #{tpu_custom_call.1} parent=5 // pred_check
        _
      $region26: #{tpu_custom_call.1} parent=5 // pred_check_branch
        %213 = sbr.rel (%p210) target = $region28
      $region27: #{tpu_custom_call.1} parent=5 // pred_region
        %s214 = ssub.s32 %s20, 1
        %s215 = sand.u32 %s47, 1
        %s216 = scalar_lea.sflag [#allocation3], %s215
        %s217 = sand.u32 %s47, 1
        %s218 = smul.addr %s217, 8
        %s219 = scalar_lea.vmem [#allocation2], %s218
        // Predicated region
        $region29: #{tpu_custom_call.1} parent=27 // pred_check
          %p220 = pneg %p60
        $region30: #{tpu_custom_call.1} parent=27 // pred_check_branch
          %222 = sbr.rel (%p220) target = $region32
        $region31: #{tpu_custom_call.1} parent=27 // pred_region
          %223 = dma.done %s216, 128
        $region32: #{tpu_custom_call.1} parent=27 // pred_fallthru
          _
        %s224 = sand.u32 %s47, 1
        %s225 = scalar_lea.sflag [#allocation3], %s224
        %s226 = sand.u32 %s47, 1
        %s227 = smul.addr %s226, 8
        %s228 = scalar_lea.vmem [#allocation2], %s227
        %p229 = pneg %p60
        %p230 = pneg %p57
        %p231 = pneg %p81
        %p232 = pneg %p78
        %p233 = pneg %p109
        %p234 = pneg %p106
        %s235 = sand.u32 %s96, 1
        %s236 = scalar_lea.sflag [#allocation4], %s235
        %s237 = sand.u32 %s96, 1
        %s238 = smul.addr %s237, 2
        %s239 = scalar_lea.vmem [#allocation5], %s238
        %p240 = pneg %p137
        %p241 = pneg %p134
        %s242 = sand.u32 %s25, 1
        %s243 = scalar_lea.sflag [#allocation7], %s242
        %s244 = sand.u32 %s124, 1
        %s245 = smul.addr %s244, 2
        %s246 = scalar_lea.vmem [#allocation6], %s245
        %p247 = pneg %p165
        %p248 = pneg %p162
        %s249 = sand.u32 %s25, 1
        %s250 = scalar_lea.sflag [#allocation7], %s249
        %s251 = sand.u32 %s152, 1
        %s252 = smul.addr %s251, 4
        %s253 = scalar_lea.vmem [#allocation8], %s252
        %s254 = smul.u32 2, %s30
        %s255 = smul.u32 2, %s30
        %s256 = smul.u32 2, %s30
        %s257 = smul.u32 2, %s30
        %v259 = vld [vmem:[%s219] sm:$0xff]
        %v261 = vcombine.high %v259, %v259
        %v263 = vpack.c.bf16 %v259, %v259
        %v264 = vpack.c.bf16 %v261, %v261
        %v265 = vld [vmem:[%s1] sm:$0xf]
        %vm266 = vcmask 31744
        %v268 = vsel %vm266, %v265, 0
        %vm270 = vcmask 1041408
        %v272 = vsel %vm270, %v263, 0
        %v275 = vsel %vm270, %v264, 0
        %277 = vmatprep.subr.bf16.mxu0 %v275
        %278 = vmatpush1.bf16.msra.mxu0 %v272
        %279 = vmatprep.subr.bf16.mxu0 0
        %280 = vmatpush1.bf16.msra.mxu0 0
        %281 = vmatprep.subr.bf16.mxu0 0
        %282 = vmatpush1.bf16.msra.mxu0 0
        %283 = vmatprep.subr.bf16.mxu0 0
        %284 = vmatpush1.bf16.msra.mxu0 0
        %285 = vmatprep.subr.bf16.mxu0 0
        %286 = vmatpush1.bf16.msra.mxu0 0
        %287 = vmatprep.subr.bf16.mxu0 0
        %288 = vmatpush1.bf16.msra.mxu0 0
        %289 = vmatprep.subr.bf16.mxu0 0
        %290 = vmatpush1.bf16.msra.mxu0 0
        %291 = vmatprep.subr.bf16.mxu0 0
        %292 = vmatpush1.bf16.msra.mxu0 0
        %293 = vmatprep.subr.bf16.mxu0 0
        %294 = vmatpush1.bf16.msra.mxu0 0
        %295 = vmatprep.subr.bf16.mxu0 0
        %296 = vmatpush1.bf16.msra.mxu0 0
        %297 = vmatprep.subr.bf16.mxu0 0
        %298 = vmatpush1.bf16.msra.mxu0 0
        %299 = vmatprep.subr.bf16.mxu0 0
        %300 = vmatpush1.bf16.msra.mxu0 0
        %301 = vmatprep.subr.bf16.mxu0 0
        %302 = vmatpush1.bf16.msra.mxu0 0
        %303 = vmatprep.subr.bf16.mxu0 0
        %304 = vmatpush1.bf16.msra.mxu0 0
        %305 = vmatprep.subr.bf16.mxu0 0
        %306 = vmatpush1.bf16.msra.mxu0 0
        %307 = vmatprep.subr.bf16.mxu0 0
        %308 = vmatpush1.bf16.msra.mxu0 0
        %309 = vmatprep.mubr.bf16.mxu0 0
        %310 = vmatmul.mubr.bf16.gmra.mrb[0].mxu0 %v268
        %v311 = vpop.f32.mrb[0].mxu0
        %v312 = vadd.f32 0.0, %v311
        %v313 = vpop.f32.mrb[0].mxu0
        %v314 = vadd.f32 0.0, %v313
        %v315 = vpop.f32.mrb[0].mxu0
        %v316 = vpop.f32.mrb[0].mxu0
        %317 = vdwg.mxu0
        %v318 = vpack.c.bf16 %v312, %v312
        %v319 = vpack.c.bf16 %v314, %v314
        %v322 = vcombine.low %v318, %v319
        %v324 = vunpack.c.l.s4 1966171168
        %v325 = vunpack.c.0.s8 %v324
        %v326 = vlaneseq
        %v327 = vshrl.u32 %v326, 7
        %v328 = vsub.s32 %v325, %v327
        %v329 = vrot.slane %v322, %v328
        %v331 = vunpack.c.l.s4 1966171168
        %v332 = vunpack.c.0.s8 %v331
        %v333 = vlaneseq
        %v334 = vshrl.u32 %v333, 7
        %v335 = vsub.s32 %v332, %v334
        %v336 = vrot.slane %v329, %v335
        %338 = vst [vmem:[%s239] sm:$0x3] %v336
        %v339 = vcombine.high %v329, %v329
        %v341 = vunpack.c.l.s4 1966171168
        %v342 = vunpack.c.0.s8 %v341
        %v343 = vlaneseq
        %v344 = vshrl.u32 %v343, 7
        %v345 = vsub.s32 %v342, %v344
        %v346 = vrot.slane %v339, %v345
        %348 = vst [vmem:[%s246] sm:$0x3] %v346
        %v350 = vunpack.c.l.s4 1983009808
        %v351 = vunpack.c.0.s8 %v350
        %v352 = vlaneseq
        %v353 = vshrl.u32 %v352, 7
        %v354 = vsub.s32 %v351, %v353
        %v355 = vrot.slane %v322, %v354
        %v356 = vcombine.high %v355, %v355
        %358 = vst [vmem:[%s253] sm:$0xf] %v356
        %s359 = sand.u32 %s96, 1
        %s360 = scalar_lea.sflag [#allocation4], %s359
        %s361 = sand.u32 %s96, 1
        %s362 = smul.addr %s361, 2
        %s363 = scalar_lea.vmem [#allocation5], %s362
        %s364 = sand.u32 %s25, 1
        %s365 = scalar_lea.sflag [#allocation7], %s364
        %s366 = sand.u32 %s124, 1
        %s367 = smul.addr %s366, 2
        %s368 = scalar_lea.vmem [#allocation6], %s367
        %s369 = sand.u32 %s25, 1
        %s370 = scalar_lea.sflag [#allocation7], %s369
        %s371 = sand.u32 %s152, 1
        %s372 = smul.addr %s371, 4
        %s373 = scalar_lea.vmem [#allocation8], %s372
        // Predicated region
        $region33: #{tpu_custom_call.1} parent=27 // pred_check
          %p374 = pneg %p106
        $region34: #{tpu_custom_call.1} parent=27 // pred_check_branch
          %376 = sbr.rel (%p374) target = $region36
        $region35: #{tpu_custom_call.1} parent=27 // pred_region
          %s377 = smul.u32 2, %s30
          %s379 = ssub.s32 32, 32
          %380 = vsyncadd %s360, %s379
          %s381 = smul.addr %s29, 2
          %s382 = sadd.s32 %s377, %s381
          %s383 = smul.addr %s382, 16
          %s384 = scalar_lea.hbm %s2, %s383
          %s386 = sshll.u32 %s363, 4
          %s387 = int_to_ptr.vmem [resolvable:$true] %s386
          %389 = dma.vmem_to_hbm [thread:$0]  %s387, 32, %s384, %s360
        $region36: #{tpu_custom_call.1} parent=27 // pred_fallthru
          _
        // Predicated region
        $region37: #{tpu_custom_call.1} parent=27 // pred_check
          %p390 = pneg %p134
        $region38: #{tpu_custom_call.1} parent=27 // pred_check_branch
          %392 = sbr.rel (%p390) target = $region40
        $region39: #{tpu_custom_call.1} parent=27 // pred_region
          %s393 = smul.u32 2, %s30
          %s395 = ssub.s32 32, 32
          %396 = vsyncadd %s365, %s395
          %s397 = smul.addr %s29, 2
          %s398 = sadd.s32 %s393, %s397
          %s399 = smul.addr %s398, 16
          %s400 = scalar_lea.hbm %s3, %s399
          %s402 = sshll.u32 %s368, 4
          %s403 = int_to_ptr.vmem [resolvable:$true] %s402
          %405 = dma.vmem_to_hbm [thread:$0]  %s403, 32, %s400, %s365
        $region40: #{tpu_custom_call.1} parent=27 // pred_fallthru
          _
        // Predicated region
        $region41: #{tpu_custom_call.1} parent=27 // pred_check
          %p406 = pneg %p162
        $region42: #{tpu_custom_call.1} parent=27 // pred_check_branch
          %408 = sbr.rel (%p406) target = $region44
        $region43: #{tpu_custom_call.1} parent=27 // pred_region
          %s409 = smul.u32 2, %s30
          %s411 = ssub.s32 64, 64
          %412 = vsyncadd %s370, %s411
          %s413 = smul.addr %s29, 2
          %s414 = sadd.s32 %s409, %s413
          %s415 = smul.addr %s414, 32
          %s416 = scalar_lea.hbm %s4, %s415
          %s418 = sshll.u32 %s373, 4
          %s419 = int_to_ptr.vmem [resolvable:$true] %s418
          %421 = dma.vmem_to_hbm [thread:$0]  %s419, 64, %s416, %s370
        $region44: #{tpu_custom_call.1} parent=27 // pred_fallthru
          _
      $region28: #{tpu_custom_call.1} parent=5 // pred_fallthru
        _
      %p422 = scmp.le.s32.totalorder 2, %s20
      // Predicated region
      $region45: #{tpu_custom_call.1} parent=5 // pred_check
        %p423 = pneg %p422
      $region46: #{tpu_custom_call.1} parent=5 // pred_check_branch
        %425 = sbr.rel (%p423) target = $region48
      $region47: #{tpu_custom_call.1} parent=5 // pred_region
        %s426 = ssub.s32 %s20, 2
        // Predicated region
        $region49: #{tpu_custom_call.1} parent=47 // pred_check
          %p427 = pneg %p112
        $region50: #{tpu_custom_call.1} parent=47 // pred_check_branch
          %429 = sbr.rel (%p427) target = $region52
        $region51: #{tpu_custom_call.1} parent=47 // pred_region
          %s430 = sand.u32 %s97, 1
          %s431 = scalar_lea.sflag [#allocation4], %s430
          %s432 = sand.u32 %s97, 1
          %s433 = smul.addr %s432, 2
          %s434 = scalar_lea.vmem [#allocation5], %s433
          %435 = dma.done %s431, 32
        $region52: #{tpu_custom_call.1} parent=47 // pred_fallthru
          _
        // Predicated region
        $region53: #{tpu_custom_call.1} parent=47 // pred_check
          %p436 = pneg %p140
        $region54: #{tpu_custom_call.1} parent=47 // pred_check_branch
          %438 = sbr.rel (%p436) target = $region56
        $region55: #{tpu_custom_call.1} parent=47 // pred_region
          %s439 = sand.u32 %s26, 1
          %s440 = scalar_lea.sflag [#allocation7], %s439
          %s441 = sand.u32 %s125, 1
          %s442 = smul.addr %s441, 2
          %s443 = scalar_lea.vmem [#allocation6], %s442
          %444 = dma.done %s440, 32
        $region56: #{tpu_custom_call.1} parent=47 // pred_fallthru
          _
        // Predicated region
        $region57: #{tpu_custom_call.1} parent=47 // pred_check
          %p445 = pneg %p168
        $region58: #{tpu_custom_call.1} parent=47 // pred_check_branch
          %447 = sbr.rel (%p445) target = $region60
        $region59: #{tpu_custom_call.1} parent=47 // pred_region
          %s448 = sand.u32 %s26, 1
          %s449 = scalar_lea.sflag [#allocation7], %s448
          %s450 = sand.u32 %s153, 1
          %s451 = smul.addr %s450, 4
          %s452 = scalar_lea.vmem [#allocation8], %s451
          %453 = dma.done %s449, 64
        $region60: #{tpu_custom_call.1} parent=47 // pred_fallthru
          _
      $region48: #{tpu_custom_call.1} parent=5 // pred_fallthru
        _
    $region6: #{tpu_custom_call.1} parent=1 // loop_footer
      %s24 = sadd.s32 1, %s20
    $region7: #{tpu_custom_call.1} parent=1 // loop_footer_branch
      %19 = sbr.rel target = $region3
    $region8: #{tpu_custom_call.1} parent=1 // loop_exit
      _
    %454 = vsyncpa [#allocation3], 1
    %s455 = scalar_lea.sflag [#allocation3], 1
    %456 = vsyncpa %s455, 1
    %457 = vsyncpa [#allocation4], 1
    %s458 = scalar_lea.sflag [#allocation4], 1
    %459 = vsyncpa %s458, 1
    %460 = vsyncpa [#allocation7], 1
    %s461 = scalar_lea.sflag [#allocation7], 1
    %462 = vsyncpa %s461, 1

</llo_original>
